<compile_context>
chip_gen: v5e
topology: v5e:2x2
jax: 0.10.0
libtpu: 0.0.40
codegen_flags: <defaults>
</compile_context>

<pallas_src>
import math
import functools

import jax
import jax.numpy as jnp
from jax import lax
from jax.experimental import pallas as pl
from jax.experimental.pallas import tpu as pltpu

NEG_MAX = float(-jnp.finfo(jnp.float32).max)
WEIGHT_DTYPE = jnp.bfloat16   # MXU operands; f32 accumulation via preferred_element_type

_CP = pltpu.CompilerParams(dimension_semantics=("parallel",),
                           vmem_limit_bytes=32 * 1024 * 1024)


def _choose_tm(M, target=256):
    """Largest token-tile that divides M, is a multiple of 8 and <= target."""
    if M <= target:
        return M
    for t in range(target, 7, -1):
        if M % t == 0 and t % 8 == 0:
            return t
    return M


# ----------------------------- Pallas kernels -------------------------------

def _groupnorm_kernel(x_ref, g_ref, b_ref, o_ref):
    # x: (G, cpg*HW) for one batch element
    x = x_ref[...]
    mu = jnp.mean(x, axis=-1, keepdims=True)
    var = jnp.mean((x - mu) ** 2, axis=-1, keepdims=True)
    o_ref[...] = ((x - mu) * lax.rsqrt(var + 1e-6)) * g_ref[...] + b_ref[...]


def _layernorm_block(x, g, b):
    mu = jnp.mean(x, axis=-1, keepdims=True)
    var = jnp.mean((x - mu) ** 2, axis=-1, keepdims=True)
    return ((x - mu) * lax.rsqrt(var + 1e-5)) * g + b


def _matmul_kernel(x_ref, w_ref, o_ref):
    o_ref[...] = jnp.dot(x_ref[...].astype(w_ref.dtype), w_ref[...],
                         preferred_element_type=jnp.float32)


def _matmul_bias_kernel(x_ref, w_ref, b_ref, o_ref):
    o_ref[...] = jnp.dot(x_ref[...].astype(w_ref.dtype), w_ref[...],
                         preferred_element_type=jnp.float32) + b_ref[...]


def _matmul_bias_res_kernel(x_ref, w_ref, b_ref, r_ref, o_ref):
    o_ref[...] = (jnp.dot(x_ref[...].astype(w_ref.dtype), w_ref[...],
                          preferred_element_type=jnp.float32)
                  + b_ref[...] + r_ref[...])


def _ln_q_kernel(x_ref, g_ref, b_ref, w_ref, o_ref):
    # LayerNorm fused into a single (no-bias) projection.
    xn = _layernorm_block(x_ref[...], g_ref[...], b_ref[...])
    o_ref[...] = jnp.dot(xn.astype(w_ref.dtype), w_ref[...],
                         preferred_element_type=jnp.float32)


def _ln_qkv_kernel(x_ref, g_ref, b_ref, w_ref, q_ref, kv_ref):
    # LayerNorm + fused QKV projection (self-attention); split result in VMEM.
    xn = _layernorm_block(x_ref[...], g_ref[...], b_ref[...])
    y = jnp.dot(xn.astype(w_ref.dtype), w_ref[...],
                preferred_element_type=jnp.float32)
    inner = q_ref.shape[-1]
    q_ref[...] = y[:, :inner]
    kv_ref[...] = y[:, inner:]


def _ln_geglu_kernel(x_ref, g_ref, b_ref, w_ref, bias_ref, o_ref):
    # LayerNorm + GEGLU projection + gating, all in one kernel.
    xn = _layernorm_block(x_ref[...], g_ref[...], b_ref[...])
    y = jnp.dot(xn.astype(w_ref.dtype), w_ref[...],
                preferred_element_type=jnp.float32) + bias_ref[...]
    half = o_ref.shape[-1]
    xp = y[:, :half]
    gate = y[:, half:]
    gelu = 0.5 * gate * (1.0 + lax.erf(gate * (1.0 / math.sqrt(2.0))))
    o_ref[...] = xp * gelu


def _attention_kernel(*refs, scale, heads, dh, has_mask, ret_probs):
    # One batch element per grid step.
    #   q:  (Lq, inner)        kv: (Lk, 2*inner)   [mask: (1, Lk) float {0,1}]
    #   o:  (Lq, inner)        [probs (mean over heads): (Lq, Lk)]
    # Attention math kept in f32 (small contraction dims, softmax stability).
    idx = 0
    q_ref = refs[idx]; idx += 1
    kv_ref = refs[idx]; idx += 1
    m_ref = None
    if has_mask:
        m_ref = refs[idx]; idx += 1
    o_ref = refs[idx]; idx += 1
    p_ref = refs[idx] if ret_probs else None

    inner = heads * dh
    q = q_ref[...]
    kv = kv_ref[...]
    k = kv[:, :inner]
    v = kv[:, inner:]
    keep = (m_ref[...] > 0.5) if has_mask else None   # (1, Lk)

    outs = []
    p_acc = None
    for h in range(heads):
        sl = slice(h * dh, (h + 1) * dh)
        qh, kh, vh = q[:, sl], k[:, sl], v[:, sl]
        sim = lax.dot_general(qh, kh, (((1,), (1,)), ((), ())),
                              preferred_element_type=jnp.float32) * scale
        if keep is not None:
            sim = jnp.where(keep, sim, NEG_MAX)
        mx = jnp.max(sim, axis=-1, keepdims=True)
        e = jnp.exp(sim - mx)
        inv = pl.reciprocal(jnp.sum(e, axis=-1, keepdims=True), approx=True)
        # Scale the (Lq, dh) PV result instead of the (Lq, Lk) probs.
        oh = jnp.dot(e, vh, preferred_element_type=jnp.float32) * inv
        outs.append(oh)
        if ret_probs:
            p = e * inv
            p_acc = p if p_acc is None else p_acc + p

    o_ref[...] = jnp.concatenate(outs, axis=-1)
    if ret_probs:
        p_ref[...] = p_acc * (1.0 / heads)


# ----------------------------- kernel wrappers -------------------------------

def group_norm(x, gamma, beta, groups=32):
    B, C, H, W = x.shape
    cpg = C // groups
    L = cpg * H * W
    xg = x.reshape(B, groups, L)
    gamma_f = jnp.broadcast_to(gamma.reshape(groups, cpg, 1),
                               (groups, cpg, H * W)).reshape(groups, L)
    beta_f = jnp.broadcast_to(beta.reshape(groups, cpg, 1),
                              (groups, cpg, H * W)).reshape(groups, L)
    out = pl.pallas_call(
        _groupnorm_kernel,
        out_shape=jax.ShapeDtypeStruct((B, groups, L), jnp.float32),
        grid=(B,),
        in_specs=[
            pl.BlockSpec((None, groups, L), lambda i: (i, 0, 0)),
            pl.BlockSpec((groups, L), lambda i: (0, 0)),
            pl.BlockSpec((groups, L), lambda i: (0, 0)),
        ],
        out_specs=pl.BlockSpec((None, groups, L), lambda i: (i, 0, 0)),
        compiler_params=_CP,
    )(xg, gamma_f, beta_f)
    return out.reshape(B, C, H, W)


def matmul(x, w, b=None, residual=None):
    """y = x @ w (+ b) (+ residual); w stored (K, N) (pre-transposed, bf16)."""
    orig = x.shape
    K = orig[-1]
    M = math.prod(orig[:-1])
    N = w.shape[1]
    x2 = x.reshape(M, K)
    TM = _choose_tm(M)
    grid = (M // TM,)
    in_specs = [pl.BlockSpec((TM, K), lambda i: (i, 0)),
                pl.BlockSpec((K, N), lambda i: (0, 0))]
    args = [x2, w]
    if b is not None:
        in_specs.append(pl.BlockSpec((1, N), lambda i: (0, 0)))
        args.append(b.reshape(1, N))
    if residual is not None:
        in_specs.append(pl.BlockSpec((TM, N), lambda i: (i, 0)))
        args.append(residual.reshape(M, N))
        kernel = _matmul_bias_res_kernel
    elif b is not None:
        kernel = _matmul_bias_kernel
    else:
        kernel = _matmul_kernel
    out = pl.pallas_call(
        kernel,
        out_shape=jax.ShapeDtypeStruct((M, N), jnp.float32),
        grid=grid,
        in_specs=in_specs,
        out_specs=pl.BlockSpec((TM, N), lambda i: (i, 0)),
        compiler_params=_CP,
    )(*args)
    return out.reshape(orig[:-1] + (N,))


def ln_q(x, g, b, w):
    B, N, D = x.shape
    Nout = w.shape[1]
    M = B * N
    TM = _choose_tm(M)
    out = pl.pallas_call(
        _ln_q_kernel,
        out_shape=jax.ShapeDtypeStruct((M, Nout), jnp.float32),
        grid=(M // TM,),
        in_specs=[pl.BlockSpec((TM, D), lambda i: (i, 0)),
                  pl.BlockSpec((1, D), lambda i: (0, 0)),
                  pl.BlockSpec((1, D), lambda i: (0, 0)),
                  pl.BlockSpec((D, Nout), lambda i: (0, 0))],
        out_specs=pl.BlockSpec((TM, Nout), lambda i: (i, 0)),
        compiler_params=_CP,
    )(x.reshape(M, D), g.reshape(1, D), b.reshape(1, D), w)
    return out.reshape(B, N, Nout)


def ln_qkv(x, g, b, w):
    B, N, D = x.shape
    inner = w.shape[1] // 3
    M = B * N
    TM = _choose_tm(M)
    q, kv = pl.pallas_call(
        _ln_qkv_kernel,
        out_shape=(jax.ShapeDtypeStruct((M, inner), jnp.float32),
                   jax.ShapeDtypeStruct((M, 2 * inner), jnp.float32)),
        grid=(M // TM,),
        in_specs=[pl.BlockSpec((TM, D), lambda i: (i, 0)),
                  pl.BlockSpec((1, D), lambda i: (0, 0)),
                  pl.BlockSpec((1, D), lambda i: (0, 0)),
                  pl.BlockSpec((D, 3 * inner), lambda i: (0, 0))],
        out_specs=(pl.BlockSpec((TM, inner), lambda i: (i, 0)),
                   pl.BlockSpec((TM, 2 * inner), lambda i: (i, 0))),
        compiler_params=_CP,
    )(x.reshape(M, D), g.reshape(1, D), b.reshape(1, D), w)
    return q.reshape(B, N, inner), kv.reshape(B, N, 2 * inner)


def ln_geglu(x, g, b, w, bias):
    B, N, D = x.shape
    F2 = w.shape[1]
    F = F2 // 2
    M = B * N
    TM = _choose_tm(M)
    out = pl.pallas_call(
        _ln_geglu_kernel,
        out_shape=jax.ShapeDtypeStruct((M, F), jnp.float32),
        grid=(M // TM,),
        in_specs=[pl.BlockSpec((TM, D), lambda i: (i, 0)),
                  pl.BlockSpec((1, D), lambda i: (0, 0)),
                  pl.BlockSpec((1, D), lambda i: (0, 0)),
                  pl.BlockSpec((D, F2), lambda i: (0, 0)),
                  pl.BlockSpec((1, F2), lambda i: (0, 0))],
        out_specs=pl.BlockSpec((TM, F), lambda i: (i, 0)),
        compiler_params=_CP,
    )(x.reshape(M, D), g.reshape(1, D), b.reshape(1, D), w, bias.reshape(1, F2))
    return out.reshape(B, N, F)


def attention(q, kv, mask_f, scale, heads, return_probs):
    """q: (B, Lq, inner), kv: (B, Lk, 2*inner); mask_f: (B, 1, Lk) float or None."""
    B, Lq, inner = q.shape
    Lk = kv.shape[1]
    dh = inner // heads
    kernel = functools.partial(_attention_kernel, scale=scale, heads=heads, dh=dh,
                               has_mask=mask_f is not None, ret_probs=return_probs)
    in_specs = [pl.BlockSpec((None, Lq, inner), lambda i: (i, 0, 0)),
                pl.BlockSpec((None, Lk, 2 * inner), lambda i: (i, 0, 0))]
    args = [q, kv]
    if mask_f is not None:
        in_specs.append(pl.BlockSpec((None, 1, Lk), lambda i: (i, 0, 0)))
        args.append(mask_f)

    if return_probs:
        out_shape = (jax.ShapeDtypeStruct((B, Lq, inner), jnp.float32),
                     jax.ShapeDtypeStruct((B, Lq, Lk), jnp.float32))
        out_specs = (pl.BlockSpec((None, Lq, inner), lambda i: (i, 0, 0)),
                     pl.BlockSpec((None, Lq, Lk), lambda i: (i, 0, 0)))
        out, probs = pl.pallas_call(kernel, out_shape=out_shape, grid=(B,),
                                    in_specs=in_specs, out_specs=out_specs,
                                    compiler_params=_CP)(*args)
        return out, probs
    out = pl.pallas_call(
        kernel,
        out_shape=jax.ShapeDtypeStruct((B, Lq, inner), jnp.float32),
        grid=(B,),
        in_specs=in_specs,
        out_specs=pl.BlockSpec((None, Lq, inner), lambda i: (i, 0, 0)),
        compiler_params=_CP,
    )(*args)
    return out, None


# ----------------------------- module forward --------------------------------

def cross_attention_block(x, ln_g, ln_b, p, heads, context=None, mask=None,
                          return_attn=False):
    """LayerNorm + CrossAttention + residual, with fused projections."""
    if context is None:
        q, kv = ln_qkv(x, ln_g, ln_b, p["qkv_w"])          # self-attention
    else:
        q = ln_q(x, ln_g, ln_b, p["q_w"])                   # LN only on query input
        kv = matmul(context, p["kv_w"])                     # context is not LN'd
    inner = q.shape[-1]
    dh = inner // heads
    mask_f = None
    if mask is not None:                                    # key mask 'b j'
        mask_f = mask.astype(jnp.float32)[:, None, :]
    out, probs = attention(q, kv, mask_f, dh ** (-0.5), heads, return_attn)
    # to_out linear (+bias) with residual fused; Dropout(0.0) is identity.
    out = matmul(out, p["out_w"], p["out_b"], residual=x)
    if return_attn:
        return out, probs                                   # probs already head-mean
    return out


def feed_forward_block(x, ln_g, ln_b, p):
    h = ln_geglu(x, ln_g, ln_b, p["proj_w"], p["proj_b"])
    return matmul(h, p["out_w"], p["out_b"], residual=x)


def basic_block(x, p, heads, context=None, mask=None, return_attn=False):
    x = cross_attention_block(x, p["norm1_g"], p["norm1_b"], p["attn1"], heads)
    if not return_attn:
        x = cross_attention_block(x, p["norm2_g"], p["norm2_b"], p["attn2"], heads,
                                  context=context, mask=mask)
        x = feed_forward_block(x, p["norm3_g"], p["norm3_b"], p["ff"])
        return x
    x, attn = cross_attention_block(x, p["norm2_g"], p["norm2_b"], p["attn2"], heads,
                                    context=context, mask=mask, return_attn=True)
    x = feed_forward_block(x, p["norm3_g"], p["norm3_b"], p["ff"])
    return x, attn


def otsu_jax(mask_in):
    """Vectorized replica of the reference otsu() (per-row, 10 thresholds)."""
    B, Hn = mask_in.shape
    mn = mask_in.min(axis=-1, keepdims=True)
    mx = mask_in.max(axis=-1, keepdims=True)
    norm = (mask_in - mn) / (mx - mn)
    Nthr = 10
    thresholds = jnp.arange(Nthr, dtype=jnp.float32) / Nthr
    low = norm[:, None, :] < thresholds[None, :, None]
    high = ~low
    low_cnt = low.sum(-1).astype(jnp.float32)
    high_cnt = high.sum(-1).astype(jnp.float32)
    low_num = low_cnt / Hn
    high_num = high_cnt / Hn
    low_mean = jnp.where(low, norm[:, None, :], 0.0).sum(-1) / low_cnt
    high_mean = jnp.where(high, norm[:, None, :], 0.0).sum(-1) / high_cnt
    g = low_num * high_num * (low_mean - high_mean) ** 2
    g_clean = jnp.where(jnp.isnan(g), -jnp.inf, g)
    best_idx = jnp.argmax(g_clean, axis=-1)
    best_val = jnp.max(g_clean, axis=-1)
    thr = jnp.where(best_val > 0.0, thresholds[best_idx], 0.0)[:, None]
    out = jnp.where(norm < thr, 0.0, norm)
    out = jnp.where(out > thr, 1.0, out)
    return out != 0.0


def spatial_transformer_forward(params, x, xr, context, ph_pos, use_img_cond=True):
    # layout: x, xr are NCHW (b, c, h, w) float32 as in the PyTorch module.
    B, C, H, W = x.shape
    x_in, xr_in = x, xr
    heads = params["n_heads"]

    def norm_proj(z):
        z = group_norm(z, params["norm_g"], params["norm_b"], groups=32)
        tokens = jnp.transpose(z.reshape(B, C, H * W), (0, 2, 1))   # b (h w) c
        return matmul(tokens, params["proj_in_w"], params["proj_in_b"])

    x_t = norm_proj(x)
    xr_t = norm_proj(xr)

    ph_idx, eot_idx = ph_pos
    loss_reg = None     # TODO(synk): training-only MSE regularizer not computed in eval
    attn_save = None
    bidx = jnp.arange(B)

    for blk in params["blocks"]:
        x_t = basic_block(x_t, blk, heads, context=context)
        xr_t, attn = basic_block(xr_t, blk, heads, context=context, return_attn=True)
        if params["image_cross"] and use_img_cond:
            attn_t = jnp.transpose(attn, (0, 2, 1))        # (B, Lc, HW)
            attn_ph = attn_t[bidx, ph_idx]                 # (B, HW)
            mask = otsu_jax(attn_ph)                       # (B, HW) bool key mask
            x_t = basic_block(x_t, params["img_cross"], heads, context=xr_t, mask=mask)

    def proj_back(zt):  # zero 1x1 conv then 'b (h w) c -> b c h w'
        z = matmul(zt, params["proj_out_w"], params["proj_out_b"])
        return jnp.transpose(z, (0, 2, 1)).reshape(B, C, H, W)

    return proj_back(x_t) + x_in, proj_back(xr_t) + xr_in, loss_reg, attn_save


# ----------------------------- parameter init --------------------------------

def init_params(key, in_channels, n_heads, d_head, depth, context_dim):
    inner = n_heads * d_head
    keys = iter(jax.random.split(key, 256))

    def nrm(shape, scale=0.05, dtype=WEIGHT_DTYPE):
        return (scale * jax.random.normal(next(keys), shape, jnp.float32)).astype(dtype)

    # All matmul weights stored pre-transposed (K, N) in bf16; biases/norms f32.
    def self_attn_params():
        return dict(
            qkv_w=nrm((inner, 3 * inner)),           # fused to_q|to_k|to_v (bias=False)
            out_w=nrm((inner, inner)),
            out_b=nrm((inner,), dtype=jnp.float32),
        )

    def cross_attn_params(ctx_dim):
        return dict(
            q_w=nrm((inner, inner)),
            kv_w=nrm((ctx_dim, 2 * inner)),          # fused to_k|to_v (bias=False)
            out_w=nrm((inner, inner)),
            out_b=nrm((inner,), dtype=jnp.float32),
        )

    def ff_params(dim):
        inner_ff = dim * 4
        return dict(
            proj_w=nrm((dim, inner_ff * 2)),         # GEGLU proj (glu=True)
            proj_b=nrm((inner_ff * 2,), dtype=jnp.float32),
            out_w=nrm((inner_ff, dim)),
            out_b=nrm((dim,), dtype=jnp.float32),
        )

    def block_params(ctx_dim):
        cd = ctx_dim if ctx_dim is not None else inner
        return dict(
            attn1=self_attn_params(),
            attn2=cross_attn_params(cd),
            ff=ff_params(inner),
            norm1_g=jnp.ones((inner,), jnp.float32), norm1_b=jnp.zeros((inner,), jnp.float32),
            norm2_g=jnp.ones((inner,), jnp.float32), norm2_b=jnp.zeros((inner,), jnp.float32),
            norm3_g=jnp.ones((inner,), jnp.float32), norm3_b=jnp.zeros((inner,), jnp.float32),
        )

    return dict(
        n_heads=n_heads,
        image_cross=True,
        norm_g=jnp.ones((in_channels,), jnp.float32),
        norm_b=jnp.zeros((in_channels,), jnp.float32),
        proj_in_w=nrm((in_channels, inner)),
        proj_in_b=nrm((inner,), dtype=jnp.float32),
        blocks=[block_params(context_dim) for _ in range(depth)],
        img_cross=block_params(None),
        proj_out_w=jnp.zeros((inner, in_channels), WEIGHT_DTYPE),   # zero_module
        proj_out_b=jnp.zeros((in_channels,), jnp.float32),
    )


# ----------------------------------- main -------------------------------------

if __name__ == "__main__":
    key = jax.random.PRNGKey(0)
    B, C, H, W = 2, 64, 8, 8              # in_channels must be divisible by 32 (GroupNorm)
    n_heads, d_head, depth = 4, 16, 1     # inner_dim = 64
    Lc, ctx_dim = 8, 32                   # text context: (B, 8, 32)

    k1, k2, k3, kp = jax.random.split(key, 4)
    x = jax.random.normal(k1, (B, C, H, W), jnp.float32)
    xr = jax.random.normal(k2, (B, C, H, W), jnp.float32)
    context = jax.random.normal(k3, (B, Lc, ctx_dim), jnp.float32)
    ph_idx = jnp.array([1, 2], dtype=jnp.int32)   # placeholder-token index per batch
    eot_idx = jnp.array([5, 6], dtype=jnp.int32)  # end-of-text index per batch

    params = init_params(kp, C, n_heads, d_head, depth, ctx_dim)

    x_out, xr_out, loss_reg, attn_save = spatial_transformer_forward(
        params, x, xr, context, (ph_idx, eot_idx), use_img_cond=True
    )
    jax.block_until_ready((x_out, xr_out))

    assert x_out.shape == (B, C, H, W) and xr_out.shape == (B, C, H, W)
    assert bool(jnp.isfinite(x_out).all()) and bool(jnp.isfinite(xr_out).all())
    print("KERNEL_OK")
</pallas_src>

<mosaic_0001>
module attributes {stable_mosaic.version = 11 : i64} {
  func.func @_groupnorm_kernel(%arg0: i32, %arg1: memref<1x32x128xf32, #tpu.memory_space<vmem>>, %arg2: memref<32x128xf32, #tpu.memory_space<vmem>>, %arg3: memref<32x128xf32, #tpu.memory_space<vmem>>, %arg4: memref<1x32x128xf32, #tpu.memory_space<vmem>>) attributes {dimension_semantics = [#tpu.dimension_semantics<parallel>], iteration_bounds = array<i64: 2>, scalar_prefetch = 0 : i64, scratch_operands = 0 : i64, tpu.core_type = #tpu.core_type<tc>, window_params = [{transform_indices = @transform_0, window_bounds = array<i64: 1, 32, 128>}, {pipeline_mode = #tpu.pipeline_mode<synchronous>, transform_indices = @transform_1, window_bounds = array<i64: 32, 128>}, {pipeline_mode = #tpu.pipeline_mode<synchronous>, transform_indices = @transform_2, window_bounds = array<i64: 32, 128>}, {transform_indices = @transform_3, window_bounds = array<i64: 1, 32, 128>}]} {
    %c0 = arith.constant 0 : index
    %c0_0 = arith.constant 0 : index
    %c0_1 = arith.constant 0 : index
    %0 = vector.load %arg1[%c0, %c0_0, %c0_1] : memref<1x32x128xf32, #tpu.memory_space<vmem>>, vector<1x32x128xf32>
    %1 = vector.shape_cast %0 : vector<1x32x128xf32> to vector<32x128xf32>
    %cst = arith.constant dense<0.000000e+00> : vector<32xf32>
    %2 = vector.multi_reduction <add>, %1, %cst [1] : vector<32x128xf32> to vector<32xf32>
    %3 = vector.shape_cast %2 : vector<32xf32> to vector<32x1xf32>
    %cst_2 = arith.constant 1.280000e+02 : f32
    %4 = vector.broadcast %cst_2 : f32 to vector<32x1xf32>
    %5 = arith.divf %3, %4 : vector<32x1xf32>
    %6 = vector.broadcast %5 : vector<32x1xf32> to vector<32x128xf32>
    %7 = arith.subf %1, %6 : vector<32x128xf32>
    %8 = arith.mulf %7, %7 : vector<32x128xf32>
    %cst_3 = arith.constant dense<0.000000e+00> : vector<32xf32>
    %9 = vector.multi_reduction <add>, %8, %cst_3 [1] : vector<32x128xf32> to vector<32xf32>
    %10 = vector.shape_cast %9 : vector<32xf32> to vector<32x1xf32>
    %cst_4 = arith.constant 1.280000e+02 : f32
    %11 = vector.broadcast %cst_4 : f32 to vector<32x1xf32>
    %12 = arith.divf %10, %11 : vector<32x1xf32>
    %13 = vector.broadcast %5 : vector<32x1xf32> to vector<32x128xf32>
    %14 = arith.subf %1, %13 : vector<32x128xf32>
    %cst_5 = arith.constant 9.99999997E-7 : f32
    %15 = vector.broadcast %cst_5 : f32 to vector<32x1xf32>
    %16 = arith.addf %12, %15 : vector<32x1xf32>
    %17 = math.rsqrt %16 : vector<32x1xf32>
    %18 = vector.broadcast %17 : vector<32x1xf32> to vector<32x128xf32>
    %19 = arith.mulf %14, %18 : vector<32x128xf32>
    %c0_6 = arith.constant 0 : index
    %c0_7 = arith.constant 0 : index
    %20 = vector.load %arg2[%c0_6, %c0_7] : memref<32x128xf32, #tpu.memory_space<vmem>>, vector<32x128xf32>
    %21 = arith.mulf %19, %20 : vector<32x128xf32>
    %c0_8 = arith.constant 0 : index
    %c0_9 = arith.constant 0 : index
    %22 = vector.load %arg3[%c0_8, %c0_9] : memref<32x128xf32, #tpu.memory_space<vmem>>, vector<32x128xf32>
    %23 = arith.addf %21, %22 : vector<32x128xf32>
    %c0_10 = arith.constant 0 : index
    %c0_11 = arith.constant 0 : index
    %c0_12 = arith.constant 0 : index
    %24 = vector.load %arg4[%c0_10, %c0_11, %c0_12] : memref<1x32x128xf32, #tpu.memory_space<vmem>>, vector<1x32x128xf32>
    %25 = vector.shape_cast %24 : vector<1x32x128xf32> to vector<32x128xf32>
    %26 = vector.shape_cast %23 : vector<32x128xf32> to vector<1x32x128xf32>
    tpu.vector_store %arg4[%c0_10, %c0_11, %c0_12], %26 {strides = array<i32>} : memref<1x32x128xf32, #tpu.memory_space<vmem>>, vector<1x32x128xf32>,
    return
  }
  func.func @transform_0(%arg0: i32) -> (i32, i32, i32) {
    %c0_i32 = arith.constant 0 : i32
    %c0_i32_0 = arith.constant 0 : i32
    %c0_i32_1 = arith.constant 0 : i32
    return %arg0, %c0_i32, %c0_i32_0 : i32, i32, i32
  }
  func.func @transform_1(%arg0: i32) -> (i32, i32) {
    %c0_i32 = arith.constant 0 : i32
    %c0_i32_0 = arith.constant 0 : i32
    %c0_i32_1 = arith.constant 0 : i32
    return %c0_i32, %c0_i32_0 : i32, i32
  }
  func.func @transform_2(%arg0: i32) -> (i32, i32) {
    %c0_i32 = arith.constant 0 : i32
    %c0_i32_0 = arith.constant 0 : i32
    %c0_i32_1 = arith.constant 0 : i32
    return %c0_i32, %c0_i32_0 : i32, i32
  }
  func.func @transform_3(%arg0: i32) -> (i32, i32, i32) {
    %c0_i32 = arith.constant 0 : i32
    %c0_i32_0 = arith.constant 0 : i32
    %c0_i32_1 = arith.constant 0 : i32
    return %arg0, %c0_i32, %c0_i32_0 : i32, i32, i32
  }
}

</mosaic_0001>

<llo_original>
// kernel: tpu_custom_call.1
$region0: #{tpu_custom_call.1}
  #allocation0 [shape = 'u32[]', space=smem, size = 0x4, offset = 0x4, fixed_abs, tag = 'smem constant byte address 0x4 - core index']
  #allocation1 [shape = 'u32[72,128]{1,0:T(1,128)}', space=vmem, size = 0x9000, scoped, tag = 'internal scratch']
  %s0 = inlined_call_operand.hbm [shape: f32[2,32,128], index: 0, kind: input, shape index: {}]
  %s1 = inlined_call_operand.hbm [shape: f32[32,128], index: 1, kind: input, shape index: {}]
  %s2 = inlined_call_operand.hbm [shape: f32[32,128], index: 2, kind: input, shape index: {}]
  %s3 = inlined_call_operand.hbm [shape: f32[2,32,128], index: 3, kind: output, shape index: {}]
  %s4 = sld [smem:[#allocation0]]
  $region57: #{tpu_custom_call.1} parent=0
    _
  %s6 = ssub.s32 1, %s4
  %s7 = scalar_select 0, %s6, %s4
  $region1: #{tpu_custom_call.1} parent=0
    #allocation2 [shape = 'u8[32768]{0}', space=vmem, size = 0x8000, scoped, tag = 'input window, operand 0']
    #allocation3 [shape = 's32[2]{0}', space=sflag, size = 0x8, scoped, tag = 'scoped memory for tpu_custom_call.1']
    #allocation4 [shape = 's32[2]{0}', space=sflag, size = 0x8, scoped, tag = 'scoped memory for tpu_custom_call.1']
    #allocation5 [shape = 'u8[16384]{0}', space=vmem, size = 0x4000, scoped, tag = 'input window, operand 1, single buffered']
    #allocation6 [shape = 's32[1]{0}', space=sflag, size = 0x4, scoped, tag = 'scoped memory for tpu_custom_call.1']
    #allocation7 [shape = 'u8[16384]{0}', space=vmem, size = 0x4000, scoped, tag = 'input window, operand 2, single buffered']
    #allocation8 [shape = 'u8[32768]{0}', space=vmem, size = 0x8000, scoped, tag = 'output window, operand 0']
    %8 = vsyncpa [#allocation3], 0
    %s9 = scalar_lea.sflag [#allocation3], 1
    %10 = vsyncpa %s9, 0
    %11 = vsyncpa [#allocation6], 0
    %12 = vsyncpa [#allocation4], 0
    %s13 = scalar_lea.sflag [#allocation4], 1
    %14 = vsyncpa %s13, 0
    loop: start=0, step=1, limit=4
    $region2: #{tpu_custom_call.1} parent=1 // loop_pre_header
      _
    $region3: #{tpu_custom_call.1} parent=1 // loop_header
      %s16 = sphi 0, %s20
      %p17 = scmp.ge.s32.totalorder %s16, 4
      %s26 = sphi 0, %s28
      %s29 = sphi 0, %s26
      %s30 = sphi 0, %s29
      %s46 = sphi 0, %s30
      %s50 = sphi 0, %s50
      %s52 = sphi 0, %s50
      %s53 = sphi 0, %s52
      %s67 = sphi 0, %s53
      %s71 = sphi 0, %s71
      %s73 = sphi 0, %s71
      %s74 = sphi 0, %s73
      %s88 = sphi 0, %s74
      %s94 = sphi 0, %s96
      %s97 = sphi 0, %s94
      %s98 = sphi 0, %s97
      %s114 = sphi 0, %s98
    $region4: #{tpu_custom_call.1} parent=1 // loop_header_branch
      %19 = sbr.rel (%p17) target = $region8
    $region5: #{tpu_custom_call.1} parent=1 // loop_body
      %s21 = ssub.s32 %s16, 1
      %s22 = ssub.s32 %s16, 2
      %s23 = sadd.s32 %s16, 1
      %s24 = ssub.s32 %s16, %s23
      %p25 = scmp.eq.s32.totalorder %s24, 0
      %s27 = sadd.s32 %s26, 1
      %s28 = scalar_select %p25, %s26, %s27
      %p31 = pneg %p25
      %p32 = scmp.eq.s32.totalorder %s16, 1
      %p33 = por %p31, %p32
      %p34 = scmp.ne.s32.totalorder %s26, %s29
      %p35 = scmp.eq.s32.totalorder %s16, 0
      %p36 = por %p34, %p35
      %p37 = scmp.ne.s32.totalorder %s26, %s29
      %p38 = scmp.eq.s32.totalorder %s21, 1
      %p39 = por %p37, %p38
      %p40 = scmp.ne.s32.totalorder %s29, %s30
      %p41 = scmp.eq.s32.totalorder %s21, 0
      %p42 = por %p40, %p41
      %p43 = scmp.ne.s32.totalorder %s29, %s30
      %p44 = scmp.eq.s32.totalorder %s22, 1
      %p45 = por %p43, %p44
      %p47 = scmp.ne.s32.totalorder %s30, %s46
      %p48 = scmp.eq.s32.totalorder %s22, 0
      %p49 = por %p47, %p48
      %s51 = sadd.s32 %s50, 1
      %p54 = scmp.eq.s32.totalorder %s16, 1
      %p55 = scmp.ne.s32.totalorder %s50, %s52
      %p56 = scmp.eq.s32.totalorder %s16, 0
      %p57 = por %p55, %p56
      %p58 = scmp.ne.s32.totalorder %s50, %s52
      %p59 = scmp.eq.s32.totalorder %s21, 1
      %p60 = por %p58, %p59
      %p61 = scmp.ne.s32.totalorder %s52, %s53
      %p62 = scmp.eq.s32.totalorder %s21, 0
      %p63 = por %p61, %p62
      %p64 = scmp.ne.s32.totalorder %s52, %s53
      %p65 = scmp.eq.s32.totalorder %s22, 1
      %p66 = por %p64, %p65
      %p68 = scmp.ne.s32.totalorder %s53, %s67
      %p69 = scmp.eq.s32.totalorder %s22, 0
      %p70 = por %p68, %p69
      %s72 = sadd.s32 %s71, 1
      %p75 = scmp.eq.s32.totalorder %s16, 1
      %p76 = scmp.ne.s32.totalorder %s71, %s73
      %p77 = scmp.eq.s32.totalorder %s16, 0
      %p78 = por %p76, %p77
      %p79 = scmp.ne.s32.totalorder %s71, %s73
      %p80 = scmp.eq.s32.totalorder %s21, 1
      %p81 = por %p79, %p80
      %p82 = scmp.ne.s32.totalorder %s73, %s74
      %p83 = scmp.eq.s32.totalorder %s21, 0
      %p84 = por %p82, %p83
      %p85 = scmp.ne.s32.totalorder %s73, %s74
      %p86 = scmp.eq.s32.totalorder %s22, 1
      %p87 = por %p85, %p86
      %p89 = scmp.ne.s32.totalorder %s74, %s88
      %p90 = scmp.eq.s32.totalorder %s22, 0
      %p91 = por %p89, %p90
      %s92 = ssub.s32 %s16, %s23
      %p93 = scmp.eq.s32.totalorder %s92, 0
      %s95 = sadd.s32 %s94, 1
      %s96 = scalar_select %p93, %s94, %s95
      %p99 = pneg %p93
      %p100 = scmp.eq.s32.totalorder %s16, 1
      %p101 = por %p99, %p100
      %p102 = scmp.ne.s32.totalorder %s94, %s97
      %p103 = scmp.eq.s32.totalorder %s16, 0
      %p104 = por %p102, %p103
      %p105 = scmp.ne.s32.totalorder %s94, %s97
      %p106 = scmp.eq.s32.totalorder %s21, 1
      %p107 = por %p105, %p106
      %p108 = scmp.ne.s32.totalorder %s97, %s98
      %p109 = scmp.eq.s32.totalorder %s21, 0
      %p110 = por %p108, %p109
      %p111 = scmp.ne.s32.totalorder %s97, %s98
      %p112 = scmp.eq.s32.totalorder %s22, 1
      %p113 = por %p111, %p112
      %p115 = scmp.ne.s32.totalorder %s98, %s114
      %p116 = scmp.eq.s32.totalorder %s22, 0
      %p117 = por %p115, %p116
      %p118 = scmp.le.s32.totalorder 1, %s16
      %p119 = scmp.lt.s32.totalorder %s16, 3
      %p120 = pnand %p118, %p119
      %p121 = pneg %p120
      // Predicated region
      $region9: #{tpu_custom_call.1} parent=5 // pred_check
        _
      $region10: #{tpu_custom_call.1} parent=5 // pred_check_branch
        %123 = sbr.rel (%p120) target = $region12
      $region11: #{tpu_custom_call.1} parent=5 // pred_region
        %s124 = ssub.s32 %s16, 1
        // Predicated region
        $region13: #{tpu_custom_call.1} parent=11 // pred_check
          %p125 = pneg %p63
        $region14: #{tpu_custom_call.1} parent=11 // pred_check_branch
          %127 = sbr.rel (%p125) target = $region16
        $region15: #{tpu_custom_call.1} parent=11 // pred_region
          %129 = vsyncadd [#allocation6], 0
          %s130 = sshll.u32 %s1, 4
          %s131 = int_to_ptr.hbm [resolvable:$true] %s130
          %s132 = sshll.u32 [#allocation5], 4
          %s133 = int_to_ptr.vmem [resolvable:$true] %s132
          %138 = dma.hbm_to_vmem [thread:$0]  %s131, 512, %s133, [#allocation6], 128, 128, 8
        $region16: #{tpu_custom_call.1} parent=11 // pred_fallthru
          _
        // Predicated region
        $region17: #{tpu_custom_call.1} parent=11 // pred_check
          %p139 = pneg %p84
        $region18: #{tpu_custom_call.1} parent=11 // pred_check_branch
          %141 = sbr.rel (%p139) target = $region20
        $region19: #{tpu_custom_call.1} parent=11 // pred_region
          %143 = vsyncadd [#allocation6], 0
          %s144 = sshll.u32 %s2, 4
          %s145 = int_to_ptr.hbm [resolvable:$true] %s144
          %s146 = sshll.u32 [#allocation7], 4
          %s147 = int_to_ptr.vmem [resolvable:$true] %s146
          %152 = dma.hbm_to_vmem [thread:$0]  %s145, 512, %s147, [#allocation6], 128, 128, 8
        $region20: #{tpu_custom_call.1} parent=11 // pred_fallthru
          _
      $region12: #{tpu_custom_call.1} parent=5 // pred_fallthru
        _
      %p153 = scmp.lt.s32.totalorder %s16, 2
      // Predicated region
      $region21: #{tpu_custom_call.1} parent=5 // pred_check
        %p154 = pneg %p153
      $region22: #{tpu_custom_call.1} parent=5 // pred_check_branch
        %156 = sbr.rel (%p154) target = $region24
      $region23: #{tpu_custom_call.1} parent=5 // pred_region
        // Predicated region
        $region25: #{tpu_custom_call.1} parent=23 // pred_check
          %p157 = pneg %p36
        $region26: #{tpu_custom_call.1} parent=23 // pred_check_branch
          %159 = sbr.rel (%p157) target = $region28
        $region27: #{tpu_custom_call.1} parent=23 // pred_region
          %s160 = sand.u32 %s26, 1
          %s161 = scalar_lea.sflag [#allocation3], %s160
          %s162 = sand.u32 %s26, 1
          %s163 = smul.addr %s162, 32
          %s164 = scalar_lea.vmem [#allocation2], %s163
          %166 = vsyncadd %s161, 0
          %s167 = smul.addr %s16, 4
          %s168 = smul.addr %s167, 8
          %s169 = scalar_lea.hbm %s0, %s168
          %s170 = sshll.u32 %s169, 4
          %s171 = int_to_ptr.hbm [resolvable:$true] %s170
          %s172 = sshll.u32 %s164, 4
          %s173 = int_to_ptr.vmem [resolvable:$true] %s172
          %178 = dma.hbm_to_vmem [thread:$0]  %s171, 512, %s173, %s161, 128, 128, 8
        $region28: #{tpu_custom_call.1} parent=23 // pred_fallthru
          _
      $region24: #{tpu_custom_call.1} parent=5 // pred_fallthru
        _
      %p179 = scmp.le.s32.totalorder 1, %s16
      %p180 = scmp.lt.s32.totalorder %s16, 3
      %p181 = pnand %p179, %p180
      %p182 = pneg %p181
      // Predicated region
      $region29: #{tpu_custom_call.1} parent=5 // pred_check
        _
      $region30: #{tpu_custom_call.1} parent=5 // pred_check_branch
        %184 = sbr.rel (%p181) target = $region32
      $region31: #{tpu_custom_call.1} parent=5 // pred_region
        %s185 = ssub.s32 %s16, 1
        %s186 = sand.u32 %s29, 1
        %s187 = scalar_lea.sflag [#allocation3], %s186
        %s188 = sand.u32 %s29, 1
        %s189 = smul.addr %s188, 32
        %s190 = scalar_lea.vmem [#allocation2], %s189
        // Predicated region
        $region33: #{tpu_custom_call.1} parent=31 // pred_check
          %p191 = pneg %p42
        $region34: #{tpu_custom_call.1} parent=31 // pred_check_branch
          %193 = sbr.rel (%p191) target = $region36
        $region35: #{tpu_custom_call.1} parent=31 // pred_region
          %195 = dma.done %s187, 512
        $region36: #{tpu_custom_call.1} parent=31 // pred_fallthru
          _
        // Predicated region
        $region37: #{tpu_custom_call.1} parent=31 // pred_check
          %p196 = pneg %p63
        $region38: #{tpu_custom_call.1} parent=31 // pred_check_branch
          %198 = sbr.rel (%p196) target = $region40
        $region39: #{tpu_custom_call.1} parent=31 // pred_region
          %200 = dma.done [#allocation6], 512
        $region40: #{tpu_custom_call.1} parent=31 // pred_fallthru
          _
        // Predicated region
        $region41: #{tpu_custom_call.1} parent=31 // pred_check
          %p201 = pneg %p84
        $region42: #{tpu_custom_call.1} parent=31 // pred_check_branch
          %203 = sbr.rel (%p201) target = $region44
        $region43: #{tpu_custom_call.1} parent=31 // pred_region
          %205 = dma.done [#allocation6], 512
        $region44: #{tpu_custom_call.1} parent=31 // pred_fallthru
          _
        %s206 = sand.u32 %s29, 1
        %s207 = scalar_lea.sflag [#allocation3], %s206
        %s208 = sand.u32 %s29, 1
        %s209 = smul.addr %s208, 32
        %s210 = scalar_lea.vmem [#allocation2], %s209
        %p211 = pneg %p42
        %p212 = pneg %p39
        %p213 = pneg %p63
        %p214 = pneg %p60
        %p215 = pneg %p84
        %p216 = pneg %p81
        %p217 = pneg %p110
        %p218 = pneg %p107
        %s219 = sand.u32 %s97, 1
        %s220 = scalar_lea.sflag [#allocation4], %s219
        %s221 = sand.u32 %s97, 1
        %s222 = smul.addr %s221, 32
        %s223 = scalar_lea.vmem [#allocation8], %s222
        %v224 = vld [vmem:[%s190] sm:$0xff]
        %v225 = vld [vmem:[%s190 + $0x8] sm:$0xff]
        %v226 = vld [vmem:[%s190 + $0x10] sm:$0xff]
        %v227 = vld [vmem:[%s190 + $0x18] sm:$0xff]
        %228 = vadd.xlane.f32.xlu0 %v224
        %v229 = vpop.xlane.xlu0 %228
        %230 = vadd.xlane.f32.xlu0 %v225
        %v231 = vpop.xlane.xlu0 %230
        %232 = vadd.xlane.f32.xlu0 %v226
        %v233 = vpop.xlane.xlu0 %232
        %234 = vadd.xlane.f32.xlu0 %v227
        %v235 = vpop.xlane.xlu0 %234
        %v236 = vrcp.pop 128.0
        %v237 = vmul.f32 128.0, %v236
        %v238 = vsub.f32 1.0, %v237
        %v239 = vmul.f32 %v236, %v238
        %v240 = vadd.f32 %v236, %v239
        %vm241 = vweird.f32 %v236
        %v242 = vsel %vm241, %v236, %v240
        %v243 = vmul.f32 %v229, %v242
        %v244 = vmul.f32 %v231, %v242
        %v245 = vmul.f32 %v233, %v242
        %v246 = vmul.f32 %v235, %v242
        %v247 = vsub.f32 %v224, %v243
        %v248 = vsub.f32 %v225, %v244
        %v249 = vsub.f32 %v226, %v245
        %v250 = vsub.f32 %v227, %v246
        %v251 = vmul.f32 %v247, %v247
        %v252 = vmul.f32 %v248, %v248
        %v253 = vmul.f32 %v249, %v249
        %v254 = vmul.f32 %v250, %v250
        %255 = vadd.xlane.f32.xlu0 %v251
        %v256 = vpop.xlane.xlu0 %255
        %257 = vadd.xlane.f32.xlu0 %v252
        %v258 = vpop.xlane.xlu0 %257
        %259 = vadd.xlane.f32.xlu0 %v253
        %v260 = vpop.xlane.xlu0 %259
        %261 = vadd.xlane.f32.xlu0 %v254
        %v262 = vpop.xlane.xlu0 %261
        %v263 = vmul.f32 %v256, %v242
        %v264 = vmul.f32 %v258, %v242
        %v265 = vmul.f32 %v260, %v242
        %v266 = vmul.f32 %v262, %v242
        %v267 = vadd.f32 %v263, 1e-06
        %v268 = vadd.f32 %v264, 1e-06
        %v269 = vadd.f32 %v265, 1e-06
        %v270 = vadd.f32 %v266, 1e-06
        %v271 = vrsqrt.pop %v267
        %v272 = vmul.f32 %v271, %v267
        %v273 = vmul.f32 %v272, %v271
        %v274 = vmul.f32 0.5, %v273
        %v275 = vsub.f32 1.5, %v274
        %v276 = vmul.f32 %v271, %v275
        %vm277 = vweird.f32 %v267
        %vm278 = vweird.f32 %v271
        %vm279 = vmor %vm277, %vm278
        %v280 = vsel %vm279, %v271, %v276
        %v281 = vrsqrt.pop %v268
        %v282 = vmul.f32 %v281, %v268
        %v283 = vmul.f32 %v282, %v281
        %v284 = vmul.f32 0.5, %v283
        %v285 = vsub.f32 1.5, %v284
        %v286 = vmul.f32 %v281, %v285
        %vm287 = vweird.f32 %v268
        %vm288 = vweird.f32 %v281
        %vm289 = vmor %vm287, %vm288
        %v290 = vsel %vm289, %v281, %v286
        %v291 = vrsqrt.pop %v269
        %v292 = vmul.f32 %v291, %v269
        %v293 = vmul.f32 %v292, %v291
        %v294 = vmul.f32 0.5, %v293
        %v295 = vsub.f32 1.5, %v294
        %v296 = vmul.f32 %v291, %v295
        %vm297 = vweird.f32 %v269
        %vm298 = vweird.f32 %v291
        %vm299 = vmor %vm297, %vm298
        %v300 = vsel %vm299, %v291, %v296
        %v301 = vrsqrt.pop %v270
        %v302 = vmul.f32 %v301, %v270
        %v303 = vmul.f32 %v302, %v301
        %v304 = vmul.f32 0.5, %v303
        %v305 = vsub.f32 1.5, %v304
        %v306 = vmul.f32 %v301, %v305
        %vm307 = vweird.f32 %v270
        %vm308 = vweird.f32 %v301
        %vm309 = vmor %vm307, %vm308
        %v310 = vsel %vm309, %v301, %v306
        %v311 = vmul.f32 %v247, %v280
        %v312 = vmul.f32 %v248, %v290
        %v313 = vmul.f32 %v249, %v300
        %v314 = vmul.f32 %v250, %v310
        %v315 = vld [vmem:[#allocation5] sm:$0xff]
        %v316 = vld [vmem:[#allocation5 + $0x8] sm:$0xff]
        %v317 = vld [vmem:[#allocation5 + $0x10] sm:$0xff]
        %v318 = vld [vmem:[#allocation5 + $0x18] sm:$0xff]
        %v319 = vmul.f32 %v311, %v315
        %v320 = vmul.f32 %v312, %v316
        %v321 = vmul.f32 %v313, %v317
        %v322 = vmul.f32 %v314, %v318
        %v323 = vld [vmem:[#allocation7] sm:$0xff]
        %v324 = vld [vmem:[#allocation7 + $0x8] sm:$0xff]
        %v325 = vld [vmem:[#allocation7 + $0x10] sm:$0xff]
        %v326 = vld [vmem:[#allocation7 + $0x18] sm:$0xff]
        %v327 = vadd.f32 %v319, %v323
        %v328 = vadd.f32 %v320, %v324
        %v329 = vadd.f32 %v321, %v325
        %v330 = vadd.f32 %v322, %v326
        %331 = vst [vmem:[%s223] sm:$0xff] %v327
        %332 = vst [vmem:[%s223 + $0x8] sm:$0xff] %v328
        %333 = vst [vmem:[%s223 + $0x10] sm:$0xff] %v329
        %334 = vst [vmem:[%s223 + $0x18] sm:$0xff] %v330
        %s335 = sand.u32 %s97, 1
        %s336 = scalar_lea.sflag [#allocation4], %s335
        %s337 = sand.u32 %s97, 1
        %s338 = smul.addr %s337, 32
        %s339 = scalar_lea.vmem [#allocation8], %s338
        // Predicated region
        $region45: #{tpu_custom_call.1} parent=31 // pred_check
          %p340 = pneg %p107
        $region46: #{tpu_custom_call.1} parent=31 // pred_check_branch
          %342 = sbr.rel (%p340) target = $region48
        $region47: #{tpu_custom_call.1} parent=31 // pred_region
          %344 = vsyncadd %s336, 0
          %s345 = smul.addr %s21, 4
          %s346 = smul.addr %s345, 8
          %s347 = scalar_lea.hbm %s3, %s346
          %s348 = sshll.u32 %s339, 4
          %s349 = int_to_ptr.vmem [resolvable:$true] %s348
          %s350 = sshll.u32 %s347, 4
          %s351 = int_to_ptr.hbm [resolvable:$true] %s350
          %356 = dma.vmem_to_hbm [thread:$0]  %s349, 512, %s351, %s336, 128, 128, 8
        $region48: #{tpu_custom_call.1} parent=31 // pred_fallthru
          _
      $region32: #{tpu_custom_call.1} parent=5 // pred_fallthru
        _
      %p357 = scmp.le.s32.totalorder 2, %s16
      // Predicated region
      $region49: #{tpu_custom_call.1} parent=5 // pred_check
        %p358 = pneg %p357
      $region50: #{tpu_custom_call.1} parent=5 // pred_check_branch
        %360 = sbr.rel (%p358) target = $region52
      $region51: #{tpu_custom_call.1} parent=5 // pred_region
        %s361 = ssub.s32 %s16, 2
        // Predicated region
        $region53: #{tpu_custom_call.1} parent=51 // pred_check
          %p362 = pneg %p113
        $region54: #{tpu_custom_call.1} parent=51 // pred_check_branch
          %364 = sbr.rel (%p362) target = $region56
        $region55: #{tpu_custom_call.1} parent=51 // pred_region
          %s365 = sand.u32 %s98, 1
          %s366 = scalar_lea.sflag [#allocation4], %s365
          %s367 = sand.u32 %s98, 1
          %s368 = smul.addr %s367, 32
          %s369 = scalar_lea.vmem [#allocation8], %s368
          %371 = dma.done %s366, 512
        $region56: #{tpu_custom_call.1} parent=51 // pred_fallthru
          _
      $region52: #{tpu_custom_call.1} parent=5 // pred_fallthru
        _
    $region6: #{tpu_custom_call.1} parent=1 // loop_footer
      %s20 = sadd.s32 1, %s16
    $region7: #{tpu_custom_call.1} parent=1 // loop_footer_branch
      %15 = sbr.rel target = $region3
    $region8: #{tpu_custom_call.1} parent=1 // loop_exit
      _
    %372 = vsyncpa [#allocation3], 1
    %s373 = scalar_lea.sflag [#allocation3], 1
    %374 = vsyncpa %s373, 1
    %375 = vsyncpa [#allocation6], 1
    %376 = vsyncpa [#allocation4], 1
    %s377 = scalar_lea.sflag [#allocation4], 1
    %378 = vsyncpa %s377, 1

</llo_original>
